<compile_context>
chip_gen: v5e
topology: v5e:2x2
jax: 0.10.0
libtpu: 0.0.40
codegen_flags: <defaults>
</compile_context>

<pallas_src>
import functools

import jax
import jax.numpy as jnp
from jax.experimental import pallas as pl
from jax.experimental.pallas import tpu as pltpu


def _round_up(x, m):
    return ((x + m - 1) // m) * m


# --------------------------------------------------------------------------
# Fused kernel: whole encoder stack for one batch element per grid step.
# --------------------------------------------------------------------------
def _fused_encoder_kernel(*refs, n_layers, stride, K, out_rows, groups0):
    """refs = (xg0, w0, b0, w1, b1, ..., o_ref, scratch_1, ..., scratch_{n-1}).

    xg0      : (1, Pg0, stride*C_in) bf16   stride-grouped layer-0 input
    w0       : (groups0, stride*C_in, cp1) bf16 ; b0 : (1, cp1) f32
    w_i (i>0): (K, cp_i, cp_{i+1}) bf16 per-tap weights ; b_i : (1, cp_{i+1}) f32
    o_ref    : (1, out_rows[-1], cp_last) bf16
    scratch_i: (Pg_i, stride, cp_i) bf16   stride-grouped intermediate
    """
    x_ref = refs[0]
    wb = refs[1:1 + 2 * n_layers]
    o_ref = refs[1 + 2 * n_layers]
    scr = refs[2 + 2 * n_layers:]

    def epilogue(acc, b_ref):
        # f32 bias add + tanh, then bf16 for storage / next matmul.
        return jnp.tanh(acc + b_ref[...]).astype(jnp.bfloat16)

    # ---- layer 0: grouped matmuls on the narrow-channel grouped input ----
    w0, b0 = wb[0], wb[1]
    r0 = out_rows[0]
    acc = jnp.dot(x_ref[0, pl.ds(0, r0), :], w0[0],
                  preferred_element_type=jnp.float32)
    for g in range(1, groups0):                      # statically unrolled
        acc = acc + jnp.dot(x_ref[0, pl.ds(g, r0), :], w0[g],
                            preferred_element_type=jnp.float32)
    y = epilogue(acc, b0)
    if n_layers == 1:
        o_ref[0, :, :] = y
    else:
        # (r0, cp1) -> (Pg1, stride, cp1): leading-dim split only (layout no-op)
        scr[0][...] = y.reshape(scr[0].shape)

    # ---- layers 1..n-1: per-tap matmuls straight out of VMEM scratch ----
    for i in range(1, n_layers):
        w_i, b_i = wb[2 * i], wb[2 * i + 1]
        r_i = out_rows[i]
        src = scr[i - 1]
        acc = None
        for k in range(K):                           # statically unrolled
            g, r = divmod(k, stride)
            op = src[pl.ds(g, r_i), r, :]            # (r_i, cp_i), static slice
            d = jnp.dot(op, w_i[k], preferred_element_type=jnp.float32)
            acc = d if acc is None else acc + d
        y = epilogue(acc, b_i)
        if i == n_layers - 1:
            o_ref[0, :, :] = y
        else:
            scr[i][...] = y.reshape(scr[i].shape)


# --------------------------------------------------------------------------
# One-time parameter preprocessing (hoisted out of the jitted forward).
# --------------------------------------------------------------------------
def prepare_encoder_params(params, *, stride):
    """Fold conv weights into MXU-friendly, lane-padded bf16 matmul operands."""
    cps = [_round_up(w.shape[0], 128) for (w, _) in params]
    layers = []
    for i, (w, b) in enumerate(params):
        c_out, c_in, K = w.shape
        cp_out = cps[i]
        if i == 0:
            # stride-grouped weights: wg[g, r*c_in + c, co] = w[co, c, g*stride+r]
            gmax = (K - 1) // stride
            groups0 = gmax + 1
            k_pad = groups0 * stride
            wp = jnp.zeros((c_out, c_in, k_pad), jnp.float32).at[:, :, :K].set(w)
            wg = jnp.transpose(wp, (2, 1, 0)).reshape(groups0, stride * c_in, c_out)
            wg = jnp.pad(wg, ((0, 0), (0, 0), (0, cp_out - c_out)))
        else:
            cp_in = cps[i - 1]
            # per-tap weights: wt[k, c, co] = w[co, c, k], lane-padded both sides
            wt = jnp.transpose(w, (2, 1, 0))
            wg = jnp.pad(wt, ((0, 0), (0, cp_in - c_in), (0, cp_out - c_out)))
        bp = jnp.zeros((1, cp_out), jnp.float32).at[0, :c_out].set(b)
        layers.append((wg.astype(jnp.bfloat16), bp))
    return layers


def init_encoder_params(key, out_channels, in_channels, kernel_size):
    """Deterministic parameter init (PyTorch-like uniform fan-in bound)."""
    params = []
    c_in = in_channels
    for c_out in out_channels:
        key, kw, kb = jax.random.split(key, 3)
        bound = 1.0 / jnp.sqrt(c_in * kernel_size)
        w = jax.random.uniform(kw, (c_out, c_in, kernel_size),
                               minval=-bound, maxval=bound, dtype=jnp.float32)
        b = jax.random.uniform(kb, (c_out,),
                               minval=-bound, maxval=bound, dtype=jnp.float32)
        params.append((w, b))
        c_in = c_out
    return params


# --------------------------------------------------------------------------
# Forward pass
# --------------------------------------------------------------------------
def encoder_forward(layers, x, *, stride, kernel_size, out_channels):
    """Matches the PyTorch Encoder.  x: (N, C_in, L) f32 NCL -> (N, C_last, L_out)."""
    n = len(out_channels)
    N, c_in, L = x.shape
    K = kernel_size
    gmax = (K - 1) // stride
    groups0 = gmax + 1

    # ---- static length plan ----
    lengths = [L]
    for _ in range(n):
        l_out = (lengths[-1] - K) // stride + 1
        assert l_out >= 1, "input too short for this Encoder configuration"
        lengths.append(l_out)

    cps = [_round_up(c, 128) for c in out_channels]

    # Backward allocation plan: out_rows[i] = rows layer i computes,
    # pgs[i] = grouped rows of layer-i input buffer.
    out_rows = [0] * n
    pgs = [0] * n
    out_rows[n - 1] = _round_up(lengths[n], 8)
    for i in range(n - 1, -1, -1):
        pgs[i] = _round_up(out_rows[i] + gmax, 8)
        assert pgs[i] >= out_rows[i] + gmax
        if i >= 1:
            out_rows[i - 1] = pgs[i] * stride
    p0 = pgs[0] * stride

    # ---- one-time layout conversion: NCL -> NLC, L pad/crop, bf16, grouped ----
    # (no channel padding for layer 0: the narrow input is DMA'd as-is)
    h = jnp.transpose(x, (0, 2, 1))                              # (N, L, C_in)
    if p0 >= L:
        h = jnp.pad(h, ((0, 0), (0, p0 - L), (0, 0)))
    else:
        h = h[:, :p0, :]
    xg0 = h.astype(jnp.bfloat16).reshape(N, pgs[0], stride * c_in)

    # ---- VMEM budget (explicit scoped limit, per review) ----
    xg_bytes = pgs[0] * stride * c_in * 2
    w_bytes = sum(int(w.size) * 2 + int(b.size) * 4 for (w, b) in layers)
    scr_bytes = sum(pgs[i] * stride * cps[i - 1] * 2 for i in range(1, n))
    out_bytes = out_rows[n - 1] * cps[-1] * 2
    tmp_f32 = max(out_rows[i] * cps[i] * 4 for i in range(n))
    est = 2 * xg_bytes + 2 * w_bytes + scr_bytes + 2 * out_bytes + 3 * tmp_f32
    vmem_limit = int(min(max(est + (8 << 20), 32 << 20), 128 << 20))

    # ---- specs ----
    in_specs = [pl.BlockSpec((1, pgs[0], stride * c_in), lambda b: (b, 0, 0))]
    flat_wb = []
    for (w, b) in layers:
        flat_wb += [w, b]
        in_specs.append(pl.BlockSpec(w.shape, lambda b: (0, 0, 0)))   # resident
        in_specs.append(pl.BlockSpec(b.shape, lambda b: (0, 0)))      # resident
    out_spec = pl.BlockSpec((1, out_rows[n - 1], cps[-1]), lambda b: (b, 0, 0))
    scratch_shapes = [pltpu.VMEM((pgs[i], stride, cps[i - 1]), jnp.bfloat16)
                      for i in range(1, n)]

    kernel = functools.partial(_fused_encoder_kernel, n_layers=n, stride=stride,
                               K=K, out_rows=tuple(out_rows), groups0=groups0)

    out = pl.pallas_call(
        kernel,
        out_shape=jax.ShapeDtypeStruct((N, out_rows[n - 1], cps[-1]), jnp.bfloat16),
        grid=(N,),
        in_specs=in_specs,
        out_specs=out_spec,
        scratch_shapes=scratch_shapes,
        compiler_params=pltpu.CompilerParams(
            dimension_semantics=("parallel",),       # megacore shards batches
            vmem_limit_bytes=vmem_limit),
    )(xg0, *flat_wb)

    out = out[:, :lengths[n], :out_channels[-1]].astype(jnp.float32)
    return jnp.transpose(out, (0, 2, 1))                         # back to NCL


def _reference_forward(params, x, stride):
    """Pure-JAX reference (lax conv) for numerical check."""
    for (w, b) in params:
        y = jax.lax.conv_general_dilated(
            x, w, window_strides=(stride,), padding="VALID",
            dimension_numbers=("NCH", "OIH", "NCH"))
        x = jnp.tanh(y + b[None, :, None])
    return x


if __name__ == "__main__":
    key = jax.random.PRNGKey(0)

    # small shapes: batch=2, in_channels=4, length=16
    N, C_in, L = 2, 4, 16
    out_channels = (32, 64)
    stride, kernel_size = 2, 4

    key, kx = jax.random.split(key)
    x = jax.random.normal(kx, (N, C_in, L), dtype=jnp.float32)

    params = init_encoder_params(key, out_channels, C_in, kernel_size)
    prepared = prepare_encoder_params(params, stride=stride)   # one-time prep

    fwd = jax.jit(functools.partial(encoder_forward, stride=stride,
                                    kernel_size=kernel_size,
                                    out_channels=out_channels))
    out = jax.block_until_ready(fwd(prepared, x))

    ref = _reference_forward(params, x, stride)
    assert out.shape == ref.shape, (out.shape, ref.shape)
    # bf16 matmul inputs / bf16 inter-layer activations with f32 accumulate
    assert jnp.allclose(out, ref, atol=3e-2, rtol=3e-2), "mismatch vs reference"

    print("KERNEL_OK")
</pallas_src>

<mosaic_0001>
module attributes {stable_mosaic.version = 11 : i64} {
  func.func @_fused_encoder_kernel(%arg0: i32, %arg1: memref<1x40x8xbf16, #tpu.memory_space<vmem>>, %arg2: memref<2x8x128xbf16, #tpu.memory_space<vmem>>, %arg3: memref<1x128xf32, #tpu.memory_space<vmem>>, %arg4: memref<4x128x128xbf16, #tpu.memory_space<vmem>>, %arg5: memref<1x128xf32, #tpu.memory_space<vmem>>, %arg6: memref<1x8x128xbf16, #tpu.memory_space<vmem>>, %arg7: memref<16x2x128xbf16, #tpu.memory_space<vmem>>) attributes {dimension_semantics = [#tpu.dimension_semantics<parallel>], iteration_bounds = array<i64: 2>, scalar_prefetch = 0 : i64, scratch_operands = 1 : i64, tpu.core_type = #tpu.core_type<tc>, window_params = [{transform_indices = @transform_0, window_bounds = array<i64: 1, 40, 8>}, {pipeline_mode = #tpu.pipeline_mode<synchronous>, transform_indices = @transform_1, window_bounds = array<i64: 2, 8, 128>}, {pipeline_mode = #tpu.pipeline_mode<synchronous>, transform_indices = @transform_2, window_bounds = array<i64: 1, 128>}, {pipeline_mode = #tpu.pipeline_mode<synchronous>, transform_indices = @transform_3, window_bounds = array<i64: 4, 128, 128>}, {pipeline_mode = #tpu.pipeline_mode<synchronous>, transform_indices = @transform_4, window_bounds = array<i64: 1, 128>}, {transform_indices = @transform_5, window_bounds = array<i64: 1, 8, 128>}]} {
    %c0 = arith.constant 0 : index
    %c0_0 = arith.constant 0 : index
    %c0_1 = arith.constant 0 : index
    %0 = vector.load %arg1[%c0, %c0_0, %c0_1] : memref<1x40x8xbf16, #tpu.memory_space<vmem>>, vector<1x32x8xbf16>
    %1 = vector.shape_cast %0 : vector<1x32x8xbf16> to vector<32x8xbf16>
    %c0_2 = arith.constant 0 : index
    %c0_3 = arith.constant 0 : index
    %c0_4 = arith.constant 0 : index
    %2 = vector.load %arg2[%c0_2, %c0_3, %c0_4] : memref<2x8x128xbf16, #tpu.memory_space<vmem>>, vector<1x8x128xbf16>
    %3 = vector.shape_cast %2 : vector<1x8x128xbf16> to vector<8x128xbf16>
    %cst = arith.constant dense<0.000000e+00> : vector<32x128xf32>
    %4 = tpu.matmul %1, %3, %cst {dimension_numbers = #tpu.dot_dimension_numbers<[1], [0], [0], [1], [0, 0, 1, 1], [], []>} : vector<32x8xbf16>, vector<8x128xbf16>, vector<32x128xf32> -> vector<32x128xf32>
    %c0_5 = arith.constant 0 : index
    %c1 = arith.constant 1 : index
    %c0_6 = arith.constant 0 : index
    %5 = vector.load %arg1[%c0_5, %c1, %c0_6] : memref<1x40x8xbf16, #tpu.memory_space<vmem>>, vector<1x32x8xbf16>
    %6 = vector.shape_cast %5 : vector<1x32x8xbf16> to vector<32x8xbf16>
    %c1_7 = arith.constant 1 : index
    %c0_8 = arith.constant 0 : index
    %c0_9 = arith.constant 0 : index
    %7 = vector.load %arg2[%c1_7, %c0_8, %c0_9] : memref<2x8x128xbf16, #tpu.memory_space<vmem>>, vector<1x8x128xbf16>
    %8 = vector.shape_cast %7 : vector<1x8x128xbf16> to vector<8x128xbf16>
    %cst_10 = arith.constant dense<0.000000e+00> : vector<32x128xf32>
    %9 = tpu.matmul %6, %8, %cst_10 {dimension_numbers = #tpu.dot_dimension_numbers<[1], [0], [0], [1], [0, 0, 1, 1], [], []>} : vector<32x8xbf16>, vector<8x128xbf16>, vector<32x128xf32> -> vector<32x128xf32>
    %10 = arith.addf %4, %9 : vector<32x128xf32>
    %c0_11 = arith.constant 0 : index
    %c0_12 = arith.constant 0 : index
    %11 = vector.load %arg3[%c0_11, %c0_12] : memref<1x128xf32, #tpu.memory_space<vmem>>, vector<1x128xf32>
    %12 = vector.broadcast %11 : vector<1x128xf32> to vector<32x128xf32>
    %13 = arith.addf %10, %12 : vector<32x128xf32>
    %14 = math.tanh %13 : vector<32x128xf32>
    %15 = arith.truncf %14 : vector<32x128xf32> to vector<32x128xbf16>
    %16 = vector.shape_cast %15 : vector<32x128xbf16> to vector<16x2x128xbf16>
    %c0_13 = arith.constant 0 : index
    %c0_14 = arith.constant 0 : index
    %c0_15 = arith.constant 0 : index
    %17 = vector.load %arg7[%c0_13, %c0_14, %c0_15] : memref<16x2x128xbf16, #tpu.memory_space<vmem>>, vector<16x2x128xbf16>
    tpu.vector_store %arg7[%c0_13, %c0_14, %c0_15], %16 {strides = array<i32>} : memref<16x2x128xbf16, #tpu.memory_space<vmem>>, vector<16x2x128xbf16>,
    %c0_16 = arith.constant 0 : index
    %c0_17 = arith.constant 0 : index
    %c0_18 = arith.constant 0 : index
    %18 = vector.load %arg7[%c0_16, %c0_17, %c0_18] : memref<16x2x128xbf16, #tpu.memory_space<vmem>>, vector<8x1x128xbf16>
    %19 = vector.shape_cast %18 : vector<8x1x128xbf16> to vector<8x128xbf16>
    %c0_19 = arith.constant 0 : index
    %c0_20 = arith.constant 0 : index
    %c0_21 = arith.constant 0 : index
    %20 = vector.load %arg4[%c0_19, %c0_20, %c0_21] : memref<4x128x128xbf16, #tpu.memory_space<vmem>>, vector<1x128x128xbf16>
    %21 = vector.shape_cast %20 : vector<1x128x128xbf16> to vector<128x128xbf16>
    %cst_22 = arith.constant dense<0.000000e+00> : vector<8x128xf32>
    %22 = tpu.matmul %19, %21, %cst_22 {dimension_numbers = #tpu.dot_dimension_numbers<[1], [0], [0], [1], [0, 0, 1, 1], [], []>} : vector<8x128xbf16>, vector<128x128xbf16>, vector<8x128xf32> -> vector<8x128xf32>
    %c0_23 = arith.constant 0 : index
    %c1_24 = arith.constant 1 : index
    %c0_25 = arith.constant 0 : index
    %23 = vector.load %arg7[%c0_23, %c1_24, %c0_25] : memref<16x2x128xbf16, #tpu.memory_space<vmem>>, vector<8x1x128xbf16>
    %24 = vector.shape_cast %23 : vector<8x1x128xbf16> to vector<8x128xbf16>
    %c1_26 = arith.constant 1 : index
    %c0_27 = arith.constant 0 : index
    %c0_28 = arith.constant 0 : index
    %25 = vector.load %arg4[%c1_26, %c0_27, %c0_28] : memref<4x128x128xbf16, #tpu.memory_space<vmem>>, vector<1x128x128xbf16>
    %26 = vector.shape_cast %25 : vector<1x128x128xbf16> to vector<128x128xbf16>
    %cst_29 = arith.constant dense<0.000000e+00> : vector<8x128xf32>
    %27 = tpu.matmul %24, %26, %cst_29 {dimension_numbers = #tpu.dot_dimension_numbers<[1], [0], [0], [1], [0, 0, 1, 1], [], []>} : vector<8x128xbf16>, vector<128x128xbf16>, vector<8x128xf32> -> vector<8x128xf32>
    %28 = arith.addf %22, %27 : vector<8x128xf32>
    %c1_30 = arith.constant 1 : index
    %c0_31 = arith.constant 0 : index
    %c0_32 = arith.constant 0 : index
    %29 = vector.load %arg7[%c1_30, %c0_31, %c0_32] : memref<16x2x128xbf16, #tpu.memory_space<vmem>>, vector<8x1x128xbf16>
    %30 = vector.shape_cast %29 : vector<8x1x128xbf16> to vector<8x128xbf16>
    %c2 = arith.constant 2 : index
    %c0_33 = arith.constant 0 : index
    %c0_34 = arith.constant 0 : index
    %31 = vector.load %arg4[%c2, %c0_33, %c0_34] : memref<4x128x128xbf16, #tpu.memory_space<vmem>>, vector<1x128x128xbf16>
    %32 = vector.shape_cast %31 : vector<1x128x128xbf16> to vector<128x128xbf16>
    %cst_35 = arith.constant dense<0.000000e+00> : vector<8x128xf32>
    %33 = tpu.matmul %30, %32, %cst_35 {dimension_numbers = #tpu.dot_dimension_numbers<[1], [0], [0], [1], [0, 0, 1, 1], [], []>} : vector<8x128xbf16>, vector<128x128xbf16>, vector<8x128xf32> -> vector<8x128xf32>
    %34 = arith.addf %28, %33 : vector<8x128xf32>
    %c1_36 = arith.constant 1 : index
    %c1_37 = arith.constant 1 : index
    %c0_38 = arith.constant 0 : index
    %35 = vector.load %arg7[%c1_36, %c1_37, %c0_38] : memref<16x2x128xbf16, #tpu.memory_space<vmem>>, vector<8x1x128xbf16>
    %36 = vector.shape_cast %35 : vector<8x1x128xbf16> to vector<8x128xbf16>
    %c3 = arith.constant 3 : index
    %c0_39 = arith.constant 0 : index
    %c0_40 = arith.constant 0 : index
    %37 = vector.load %arg4[%c3, %c0_39, %c0_40] : memref<4x128x128xbf16, #tpu.memory_space<vmem>>, vector<1x128x128xbf16>
    %38 = vector.shape_cast %37 : vector<1x128x128xbf16> to vector<128x128xbf16>
    %cst_41 = arith.constant dense<0.000000e+00> : vector<8x128xf32>
    %39 = tpu.matmul %36, %38, %cst_41 {dimension_numbers = #tpu.dot_dimension_numbers<[1], [0], [0], [1], [0, 0, 1, 1], [], []>} : vector<8x128xbf16>, vector<128x128xbf16>, vector<8x128xf32> -> vector<8x128xf32>
    %40 = arith.addf %34, %39 : vector<8x128xf32>
    %c0_42 = arith.constant 0 : index
    %c0_43 = arith.constant 0 : index
    %41 = vector.load %arg5[%c0_42, %c0_43] : memref<1x128xf32, #tpu.memory_space<vmem>>, vector<1x128xf32>
    %42 = vector.broadcast %41 : vector<1x128xf32> to vector<8x128xf32>
    %43 = arith.addf %40, %42 : vector<8x128xf32>
    %44 = math.tanh %43 : vector<8x128xf32>
    %45 = arith.truncf %44 : vector<8x128xf32> to vector<8x128xbf16>
    %c0_44 = arith.constant 0 : index
    %c0_45 = arith.constant 0 : index
    %c0_46 = arith.constant 0 : index
    %46 = vector.load %arg6[%c0_44, %c0_45, %c0_46] : memref<1x8x128xbf16, #tpu.memory_space<vmem>>, vector<1x8x128xbf16>
    %47 = vector.shape_cast %46 : vector<1x8x128xbf16> to vector<8x128xbf16>
    %48 = vector.shape_cast %45 : vector<8x128xbf16> to vector<1x8x128xbf16>
    tpu.vector_store %arg6[%c0_44, %c0_45, %c0_46], %48 {strides = array<i32>} : memref<1x8x128xbf16, #tpu.memory_space<vmem>>, vector<1x8x128xbf16>,
    return
  }
  func.func @transform_0(%arg0: i32) -> (i32, i32, i32) {
    %c0_i32 = arith.constant 0 : i32
    %c0_i32_0 = arith.constant 0 : i32
    %c0_i32_1 = arith.constant 0 : i32
    return %arg0, %c0_i32, %c0_i32_0 : i32, i32, i32
  }
  func.func @transform_1(%arg0: i32) -> (i32, i32, i32) {
    %c0_i32 = arith.constant 0 : i32
    %c0_i32_0 = arith.constant 0 : i32
    %c0_i32_1 = arith.constant 0 : i32
    %c0_i32_2 = arith.constant 0 : i32
    return %c0_i32, %c0_i32_0, %c0_i32_1 : i32, i32, i32
  }
  func.func @transform_2(%arg0: i32) -> (i32, i32) {
    %c0_i32 = arith.constant 0 : i32
    %c0_i32_0 = arith.constant 0 : i32
    %c0_i32_1 = arith.constant 0 : i32
    return %c0_i32, %c0_i32_0 : i32, i32
  }
  func.func @transform_3(%arg0: i32) -> (i32, i32, i32) {
    %c0_i32 = arith.constant 0 : i32
    %c0_i32_0 = arith.constant 0 : i32
    %c0_i32_1 = arith.constant 0 : i32
    %c0_i32_2 = arith.constant 0 : i32
    return %c0_i32, %c0_i32_0, %c0_i32_1 : i32, i32, i32
  }
  func.func @transform_4(%arg0: i32) -> (i32, i32) {
    %c0_i32 = arith.constant 0 : i32
    %c0_i32_0 = arith.constant 0 : i32
    %c0_i32_1 = arith.constant 0 : i32
    return %c0_i32, %c0_i32_0 : i32, i32
  }
  func.func @transform_5(%arg0: i32) -> (i32, i32, i32) {
    %c0_i32 = arith.constant 0 : i32
    %c0_i32_0 = arith.constant 0 : i32
    %c0_i32_1 = arith.constant 0 : i32
    return %arg0, %c0_i32, %c0_i32_0 : i32, i32, i32
  }
}

</mosaic_0001>

<llo_original>
// kernel: encoder_forward.1
$region0: #{encoder_forward.1}
  #allocation0 [shape = 'u32[]', space=smem, size = 0x4, offset = 0x4, fixed_abs, tag = 'smem constant byte address 0x4 - core index']
  #allocation1 [shape = 'u32[72,128]{1,0:T(1,128)}', space=vmem, size = 0x9000, scoped, tag = 'internal scratch']
  #allocation2 [shape = 'bf16[16,2,128]{2,1,0:T(2,128)(2,1)}', space=vmem, size = 0x2000, scoped, tag = 'scratch operand']
  %s0 = inlined_call_operand.vmem [shape: bf16[2,40,8], index: 0, kind: input, shape index: {}]
  %s1 = inlined_call_operand.vmem [shape: bf16[2,8,128], index: 1, kind: input, shape index: {}]
  %s2 = inlined_call_operand.vmem [shape: f32[1,128], index: 2, kind: input, shape index: {}]
  %s3 = inlined_call_operand.hbm [shape: bf16[4,128,128], index: 3, kind: input, shape index: {}]
  %s4 = inlined_call_operand.vmem [shape: f32[1,128], index: 4, kind: input, shape index: {}]
  %s5 = inlined_call_operand.vmem [shape: bf16[2,8,128], index: 5, kind: output, shape index: {}]
  %s6 = sld [smem:[#allocation0]]
  $region57: #{encoder_forward.1} parent=0
    _
  %s8 = ssub.s32 1, %s6
  %s9 = scalar_select 0, %s8, %s6
  $region1: #{encoder_forward.1} parent=0
    #allocation3 [shape = 'u8[131072]{0}', space=vmem, size = 0x20000, scoped, tag = 'input window, operand 3, single buffered']
    #allocation4 [shape = 's32[2]{0}', space=sflag, size = 0x8, scoped, tag = 'scoped memory for encoder_forward.1']
    %10 = vsyncpa [#allocation4], 0
    loop: start=0, step=1, limit=4
    $region2: #{encoder_forward.1} parent=1 // loop_pre_header
      _
    $region3: #{encoder_forward.1} parent=1 // loop_header
      %s12 = sphi 0, %s16
      %p13 = scmp.ge.s32.totalorder %s12, 4
      %s22 = sphi 0, %s24
      %s25 = sphi 0, %s22
      %s26 = sphi 0, %s25
      %s42 = sphi 0, %s26
      %s46 = sphi 0, %s46
      %s48 = sphi 0, %s46
      %s49 = sphi 0, %s48
      %s63 = sphi 0, %s49
      %s67 = sphi 0, %s67
      %s69 = sphi 0, %s67
      %s70 = sphi 0, %s69
      %s84 = sphi 0, %s70
      %s88 = sphi 0, %s88
      %s90 = sphi 0, %s88
      %s91 = sphi 0, %s90
      %s105 = sphi 0, %s91
      %s109 = sphi 0, %s109
      %s111 = sphi 0, %s109
      %s112 = sphi 0, %s111
      %s126 = sphi 0, %s112
      %s132 = sphi 0, %s134
      %s135 = sphi 0, %s132
      %s136 = sphi 0, %s135
      %s152 = sphi 0, %s136
    $region4: #{encoder_forward.1} parent=1 // loop_header_branch
      %15 = sbr.rel (%p13) target = $region8
    $region5: #{encoder_forward.1} parent=1 // loop_body
      %s17 = ssub.s32 %s12, 1
      %s18 = ssub.s32 %s12, 2
      %s19 = sadd.s32 %s12, 1
      %s20 = ssub.s32 %s12, %s19
      %p21 = scmp.eq.s32.totalorder %s20, 0
      %s23 = sadd.s32 %s22, 1
      %s24 = scalar_select %p21, %s22, %s23
      %p27 = pneg %p21
      %p28 = scmp.eq.s32.totalorder %s12, 1
      %p29 = por %p27, %p28
      %p30 = scmp.ne.s32.totalorder %s22, %s25
      %p31 = scmp.eq.s32.totalorder %s12, 0
      %p32 = por %p30, %p31
      %p33 = scmp.ne.s32.totalorder %s22, %s25
      %p34 = scmp.eq.s32.totalorder %s17, 1
      %p35 = por %p33, %p34
      %p36 = scmp.ne.s32.totalorder %s25, %s26
      %p37 = scmp.eq.s32.totalorder %s17, 0
      %p38 = por %p36, %p37
      %p39 = scmp.ne.s32.totalorder %s25, %s26
      %p40 = scmp.eq.s32.totalorder %s18, 1
      %p41 = por %p39, %p40
      %p43 = scmp.ne.s32.totalorder %s26, %s42
      %p44 = scmp.eq.s32.totalorder %s18, 0
      %p45 = por %p43, %p44
      %s47 = sadd.s32 %s46, 1
      %p50 = scmp.eq.s32.totalorder %s12, 1
      %p51 = scmp.ne.s32.totalorder %s46, %s48
      %p52 = scmp.eq.s32.totalorder %s12, 0
      %p53 = por %p51, %p52
      %p54 = scmp.ne.s32.totalorder %s46, %s48
      %p55 = scmp.eq.s32.totalorder %s17, 1
      %p56 = por %p54, %p55
      %p57 = scmp.ne.s32.totalorder %s48, %s49
      %p58 = scmp.eq.s32.totalorder %s17, 0
      %p59 = por %p57, %p58
      %p60 = scmp.ne.s32.totalorder %s48, %s49
      %p61 = scmp.eq.s32.totalorder %s18, 1
      %p62 = por %p60, %p61
      %p64 = scmp.ne.s32.totalorder %s49, %s63
      %p65 = scmp.eq.s32.totalorder %s18, 0
      %p66 = por %p64, %p65
      %s68 = sadd.s32 %s67, 1
      %p71 = scmp.eq.s32.totalorder %s12, 1
      %p72 = scmp.ne.s32.totalorder %s67, %s69
      %p73 = scmp.eq.s32.totalorder %s12, 0
      %p74 = por %p72, %p73
      %p75 = scmp.ne.s32.totalorder %s67, %s69
      %p76 = scmp.eq.s32.totalorder %s17, 1
      %p77 = por %p75, %p76
      %p78 = scmp.ne.s32.totalorder %s69, %s70
      %p79 = scmp.eq.s32.totalorder %s17, 0
      %p80 = por %p78, %p79
      %p81 = scmp.ne.s32.totalorder %s69, %s70
      %p82 = scmp.eq.s32.totalorder %s18, 1
      %p83 = por %p81, %p82
      %p85 = scmp.ne.s32.totalorder %s70, %s84
      %p86 = scmp.eq.s32.totalorder %s18, 0
      %p87 = por %p85, %p86
      %s89 = sadd.s32 %s88, 1
      %p92 = scmp.eq.s32.totalorder %s12, 1
      %p93 = scmp.ne.s32.totalorder %s88, %s90
      %p94 = scmp.eq.s32.totalorder %s12, 0
      %p95 = por %p93, %p94
      %p96 = scmp.ne.s32.totalorder %s88, %s90
      %p97 = scmp.eq.s32.totalorder %s17, 1
      %p98 = por %p96, %p97
      %p99 = scmp.ne.s32.totalorder %s90, %s91
      %p100 = scmp.eq.s32.totalorder %s17, 0
      %p101 = por %p99, %p100
      %p102 = scmp.ne.s32.totalorder %s90, %s91
      %p103 = scmp.eq.s32.totalorder %s18, 1
      %p104 = por %p102, %p103
      %p106 = scmp.ne.s32.totalorder %s91, %s105
      %p107 = scmp.eq.s32.totalorder %s18, 0
      %p108 = por %p106, %p107
      %s110 = sadd.s32 %s109, 1
      %p113 = scmp.eq.s32.totalorder %s12, 1
      %p114 = scmp.ne.s32.totalorder %s109, %s111
      %p115 = scmp.eq.s32.totalorder %s12, 0
      %p116 = por %p114, %p115
      %p117 = scmp.ne.s32.totalorder %s109, %s111
      %p118 = scmp.eq.s32.totalorder %s17, 1
      %p119 = por %p117, %p118
      %p120 = scmp.ne.s32.totalorder %s111, %s112
      %p121 = scmp.eq.s32.totalorder %s17, 0
      %p122 = por %p120, %p121
      %p123 = scmp.ne.s32.totalorder %s111, %s112
      %p124 = scmp.eq.s32.totalorder %s18, 1
      %p125 = por %p123, %p124
      %p127 = scmp.ne.s32.totalorder %s112, %s126
      %p128 = scmp.eq.s32.totalorder %s18, 0
      %p129 = por %p127, %p128
      %s130 = ssub.s32 %s12, %s19
      %p131 = scmp.eq.s32.totalorder %s130, 0
      %s133 = sadd.s32 %s132, 1
      %s134 = scalar_select %p131, %s132, %s133
      %p137 = pneg %p131
      %p138 = scmp.eq.s32.totalorder %s12, 1
      %p139 = por %p137, %p138
      %p140 = scmp.ne.s32.totalorder %s132, %s135
      %p141 = scmp.eq.s32.totalorder %s12, 0
      %p142 = por %p140, %p141
      %p143 = scmp.ne.s32.totalorder %s132, %s135
      %p144 = scmp.eq.s32.totalorder %s17, 1
      %p145 = por %p143, %p144
      %p146 = scmp.ne.s32.totalorder %s135, %s136
      %p147 = scmp.eq.s32.totalorder %s17, 0
      %p148 = por %p146, %p147
      %p149 = scmp.ne.s32.totalorder %s135, %s136
      %p150 = scmp.eq.s32.totalorder %s18, 1
      %p151 = por %p149, %p150
      %p153 = scmp.ne.s32.totalorder %s136, %s152
      %p154 = scmp.eq.s32.totalorder %s18, 0
      %p155 = por %p153, %p154
      %p156 = scmp.le.s32.totalorder 1, %s12
      %p157 = scmp.lt.s32.totalorder %s12, 3
      %p158 = pnand %p156, %p157
      %p159 = pneg %p158
      // Predicated region
      $region9: #{encoder_forward.1} parent=5 // pred_check
        _
      $region10: #{encoder_forward.1} parent=5 // pred_check_branch
        %161 = sbr.rel (%p158) target = $region12
      $region11: #{encoder_forward.1} parent=5 // pred_region
        %s162 = ssub.s32 %s12, 1
        // Predicated region
        $region13: #{encoder_forward.1} parent=11 // pred_check
          %p163 = pneg %p59
        $region14: #{encoder_forward.1} parent=11 // pred_check_branch
          %165 = sbr.rel (%p163) target = $region16
        $region15: #{encoder_forward.1} parent=11 // pred_region
          _
        $region16: #{encoder_forward.1} parent=11 // pred_fallthru
          _
        // Predicated region
        $region17: #{encoder_forward.1} parent=11 // pred_check
          %p166 = pneg %p80
        $region18: #{encoder_forward.1} parent=11 // pred_check_branch
          %168 = sbr.rel (%p166) target = $region20
        $region19: #{encoder_forward.1} parent=11 // pred_region
          _
        $region20: #{encoder_forward.1} parent=11 // pred_fallthru
          _
        // Predicated region
        $region21: #{encoder_forward.1} parent=11 // pred_check
          %p169 = pneg %p101
        $region22: #{encoder_forward.1} parent=11 // pred_check_branch
          %171 = sbr.rel (%p169) target = $region24
        $region23: #{encoder_forward.1} parent=11 // pred_region
          %173 = vsyncadd [#allocation4], 0
          %s174 = sshll.u32 %s3, 4
          %s175 = int_to_ptr.hbm [resolvable:$true] %s174
          %s176 = sshll.u32 [#allocation3], 4
          %s177 = int_to_ptr.vmem [resolvable:$true] %s176
          %182 = dma.hbm_to_vmem [thread:$0]  %s175, 4096, %s177, [#allocation4], 64, 64, 4
        $region24: #{encoder_forward.1} parent=11 // pred_fallthru
          _
        // Predicated region
        $region25: #{encoder_forward.1} parent=11 // pred_check
          %p183 = pneg %p122
        $region26: #{encoder_forward.1} parent=11 // pred_check_branch
          %185 = sbr.rel (%p183) target = $region28
        $region27: #{encoder_forward.1} parent=11 // pred_region
          _
        $region28: #{encoder_forward.1} parent=11 // pred_fallthru
          _
      $region12: #{encoder_forward.1} parent=5 // pred_fallthru
        _
      %p186 = scmp.lt.s32.totalorder %s12, 2
      // Predicated region
      $region29: #{encoder_forward.1} parent=5 // pred_check
        %p187 = pneg %p186
      $region30: #{encoder_forward.1} parent=5 // pred_check_branch
        %189 = sbr.rel (%p187) target = $region32
      $region31: #{encoder_forward.1} parent=5 // pred_region
        // Predicated region
        $region33: #{encoder_forward.1} parent=31 // pred_check
          %p190 = pneg %p32
        $region34: #{encoder_forward.1} parent=31 // pred_check_branch
          %192 = sbr.rel (%p190) target = $region36
        $region35: #{encoder_forward.1} parent=31 // pred_region
          %p193 = scmp.lt.s32.totalorder %s12, 1
          %s194 = scalar_select %p193, %s12, 1
          %s195 = smul.addr %s194, 5
          %s196 = smul.addr %s195, 4
          %s197 = scalar_lea.vmem %s0, %s196
        $region36: #{encoder_forward.1} parent=31 // pred_fallthru
          _
      $region32: #{encoder_forward.1} parent=5 // pred_fallthru
        _
      %p198 = scmp.le.s32.totalorder 1, %s12
      %p199 = scmp.lt.s32.totalorder %s12, 3
      %p200 = pnand %p198, %p199
      %p201 = pneg %p200
      // Predicated region
      $region37: #{encoder_forward.1} parent=5 // pred_check
        _
      $region38: #{encoder_forward.1} parent=5 // pred_check_branch
        %203 = sbr.rel (%p200) target = $region40
      $region39: #{encoder_forward.1} parent=5 // pred_region
        %s204 = ssub.s32 %s12, 1
        // Predicated region
        $region41: #{encoder_forward.1} parent=39 // pred_check
          %p205 = pneg %p101
        $region42: #{encoder_forward.1} parent=39 // pred_check_branch
          %207 = sbr.rel (%p205) target = $region44
        $region43: #{encoder_forward.1} parent=39 // pred_region
          %209 = dma.done [#allocation4], 4096
        $region44: #{encoder_forward.1} parent=39 // pred_fallthru
          _
        %p210 = scmp.lt.s32.totalorder %s17, 1
        %s211 = scalar_select %p210, %s17, 1
        %s212 = smul.addr %s211, 5
        %s213 = smul.addr %s212, 4
        %s214 = scalar_lea.vmem %s0, %s213
        %p215 = pneg %p38
        %p216 = pneg %p35
        %p217 = pneg %p59
        %p218 = pneg %p56
        %p219 = pneg %p80
        %p220 = pneg %p77
        %p221 = pneg %p101
        %p222 = pneg %p98
        %p223 = pneg %p122
        %p224 = pneg %p119
        %p225 = pneg %p148
        %p226 = pneg %p145
        %p227 = scmp.lt.s32.totalorder %s17, 1
        %s228 = scalar_select %p227, %s17, 1
        %s229 = smul.addr %s228, 4
        %s230 = scalar_lea.vmem %s5, %s229
        %p231 = scmp.lt.s32.totalorder %s17, 1
        %s232 = scalar_select %p231, %s17, 1
        %s233 = smul.addr %s232, 5
        %s234 = smul.addr %s233, 4
        %s235 = scalar_lea.vmem %s0, %s234
        %p236 = scmp.lt.s32.totalorder %s17, 1
        %s237 = scalar_select %p236, %s17, 1
        %s238 = smul.addr %s237, 4
        %s239 = scalar_lea.vmem %s5, %s238
        %v241 = vld [vmem:[%s235] sm:$0xf]
        %v242 = vld [vmem:[%s235 + $0x4] sm:$0xf]
        %v243 = vld [vmem:[%s235 + $0x8] sm:$0xf]
        %v244 = vld [vmem:[%s235 + $0xc] sm:$0xf]
        %v245 = vld [vmem:[%s1] sm:$0xf]
        %v246 = vld [vmem:[%s235 + $0x10] sm:$0x1]
        %s247 = scalar_lea.vmem %s1, 4
        %v248 = vld [vmem:[%s247] sm:$0xf]
        %v254 = vunpack.c.l.b16 %v241
        %v255 = vunpack.c.l.b16 %v242
        %v256 = vunpack.c.l.b16 %v243
        %v257 = vunpack.c.l.b16 %v244
        %v258 = vunpack.c.l.b16 %v246
        %v259 = vpack.c.b16 %v255, %v254
        %v260 = vpack.c.b16 %v257, %v256
        %v261 = vpack.c.b16 %v258, %v258
        %vm262 = vsmask.f32 7424
        %v264 = vshrl.u32 %v259, 16
        %v266 = vshll.u32 %v259, 16
        %v268 = vrot.slane %v266, 1
        %v269 = vor.u32 %v264, %v268
        %v271 = vshll.u32 %v260, 16
        %v273 = vrot.slane %v271, 1
        %v274 = vsel %vm262, %v269, %v273
        %v275 = vshrl.u32 %v260, 16
        %v277 = vor.u32 %v275, %v273
        %v279 = vshll.u32 %v261, 16
        %v281 = vrot.slane %v279, 1
        %v282 = vsel %vm262, %v277, %v281
        %vm283 = vcmask 64512
        %v285 = vsel %vm283, %v274, 0
        %v288 = vsel %vm283, %v282, 0
        %vm290 = vcmask 1043456
        %v292 = vsel %vm290, %v248, 0
        %294 = vmatpush.bf16.msra.mxu0 0
        %295 = vmatpush.bf16.msra.mxu0 0
        %296 = vmatpush.bf16.msra.mxu0 0
        %297 = vmatpush.bf16.msra.mxu0 0
        %298 = vmatpush.bf16.msra.mxu0 0
        %299 = vmatpush.bf16.msra.mxu0 0
        %300 = vmatpush.bf16.msra.mxu0 0
        %301 = vmatpush.bf16.msra.mxu0 %v292
        %302 = vmatmul.bf16.gmra.mxu0 %v285
        %v303 = vpop.f32.mrf.mxu0
        %v304 = vadd.f32 0.0, %v303
        %v305 = vpop.f32.mrf.mxu0
        %v306 = vadd.f32 0.0, %v305
        %307 = vmatmul.bf16.gmra.mxu0 %v288
        %v308 = vpop.f32.mrf.mxu0
        %v309 = vadd.f32 0.0, %v308
        %v310 = vpop.f32.mrf.mxu0
        %v311 = vadd.f32 0.0, %v310
        %312 = vdwg.mxu0
        %v313 = vsel %vm283, %v259, 0
        %v315 = vsel %vm283, %v260, 0
        %v318 = vsel %vm290, %v245, 0
        %320 = vmatpush.bf16.msra.mxu0 0
        %321 = vmatpush.bf16.msra.mxu0 0
        %322 = vmatpush.bf16.msra.mxu0 0
        %323 = vmatpush.bf16.msra.mxu0 0
        %324 = vmatpush.bf16.msra.mxu0 0
        %325 = vmatpush.bf16.msra.mxu0 0
        %326 = vmatpush.bf16.msra.mxu0 0
        %327 = vmatpush.bf16.msra.mxu0 %v318
        %328 = vmatmul.bf16.gmra.mxu0 %v313
        %v329 = vpop.f32.mrf.mxu0
        %v330 = vadd.f32 %v304, %v329
        %v331 = vpop.f32.mrf.mxu0
        %v332 = vadd.f32 %v306, %v331
        %333 = vmatmul.bf16.gmra.mxu0 %v315
        %v334 = vpop.f32.mrf.mxu0
        %v335 = vadd.f32 %v309, %v334
        %v336 = vpop.f32.mrf.mxu0
        %v337 = vadd.f32 %v311, %v336
        %338 = vdwg.mxu0
        %v339 = vld [vmem:[%s2] sm:$0x1]
        %v341 = vperm.slane %v339, 0
        %v343 = vadd.f32 %v330, %v341
        %v344 = vadd.f32 %v332, %v341
        %v345 = vadd.f32 %v335, %v341
        %v346 = vadd.f32 %v337, %v341
        %v347 = vtanh.pop %v343
        %v348 = vtanh.pop %v344
        %v349 = vtanh.pop %v345
        %v350 = vtanh.pop %v346
        %v351 = vpack.c.bf16 %v347, %v347
        %v352 = vpack.c.bf16 %v348, %v348
        %v353 = vpack.c.bf16 %v349, %v349
        %v354 = vpack.c.bf16 %v350, %v350
        %v359 = vrot.slane %v351, 3
        %v360 = vrot.slane %v352, 3
        %v361 = vrot.slane %v353, 3
        %v362 = vrot.slane %v354, 3
        %vm363 = vcmask 1040384
        %v366 = vsel %vm363, %v351, %v359
        %vm367 = vcmask 1041409
        %v368 = vsel %vm367, %v351, %v359
        %v370 = vrot.slane %v368, 1
        %vm371 = vcmask 1042434
        %v372 = vsel %vm371, %v351, %v359
        %v374 = vrot.slane %v372, 2
        %vm375 = vcmask 1043459
        %v376 = vsel %vm375, %v351, %v359
        %v378 = vrot.slane %v376, 3
        %v381 = vsel %vm363, %v352, %v360
        %v382 = vsel %vm367, %v352, %v360
        %v384 = vrot.slane %v382, 1
        %v385 = vsel %vm371, %v352, %v360
        %v387 = vrot.slane %v385, 2
        %v388 = vsel %vm375, %v352, %v360
        %v390 = vrot.slane %v388, 3
        %v393 = vsel %vm363, %v353, %v361
        %v394 = vsel %vm367, %v353, %v361
        %v396 = vrot.slane %v394, 1
        %v397 = vsel %vm371, %v353, %v361
        %v399 = vrot.slane %v397, 2
        %v400 = vsel %vm375, %v353, %v361
        %v402 = vrot.slane %v400, 3
        %v405 = vsel %vm363, %v354, %v362
        %v406 = vsel %vm367, %v354, %v362
        %v408 = vrot.slane %v406, 1
        %v409 = vsel %vm371, %v354, %v362
        %v411 = vrot.slane %v409, 2
        %v412 = vsel %vm375, %v354, %v362
        %v414 = vrot.slane %v412, 3
        %431 = vst [vmem:[#allocation2] sm:$0x1] %v366
        %432 = vst [vmem:[#allocation2 + $0x1] sm:$0x1] %v370
        %433 = vst [vmem:[#allocation2 + $0x2] sm:$0x1] %v374
        %434 = vst [vmem:[#allocation2 + $0x3] sm:$0x1] %v378
        %435 = vst [vmem:[#allocation2 + $0x4] sm:$0x1] %v381
        %436 = vst [vmem:[#allocation2 + $0x5] sm:$0x1] %v384
        %437 = vst [vmem:[#allocation2 + $0x6] sm:$0x1] %v387
        %438 = vst [vmem:[#allocation2 + $0x7] sm:$0x1] %v390
        %439 = vst [vmem:[#allocation2 + $0x8] sm:$0x1] %v393
        %440 = vst [vmem:[#allocation2 + $0x9] sm:$0x1] %v396
        %441 = vst [vmem:[#allocation2 + $0xa] sm:$0x1] %v399
        %442 = vst [vmem:[#allocation2 + $0xb] sm:$0x1] %v402
        %443 = vst [vmem:[#allocation2 + $0xc] sm:$0x1] %v405
        %444 = vst [vmem:[#allocation2 + $0xd] sm:$0x1] %v408
        %445 = vst [vmem:[#allocation2 + $0xe] sm:$0x1] %v411
        %446 = vst [vmem:[#allocation2 + $0xf] sm:$0x1] %v414
        %v447 = vld [vmem:[#allocation2] sm:$0x1]
        %v448 = vld [vmem:[#allocation2 + $0x1] sm:$0x1]
        %v449 = vld [vmem:[#allocation2 + $0x2] sm:$0x1]
        %v450 = vld [vmem:[#allocation2 + $0x3] sm:$0x1]
        %v451 = vld [vmem:[#allocation2 + $0x4] sm:$0x1]
        %v452 = vld [vmem:[#allocation2 + $0x5] sm:$0x1]
        %v453 = vld [vmem:[#allocation2 + $0x6] sm:$0x1]
        %v454 = vld [vmem:[#allocation2 + $0x7] sm:$0x1]
        %v455 = vld [vmem:[#allocation3] sm:$0xf]
        %v456 = vld [vmem:[#allocation3 + $0x4] sm:$0xf]
        %v457 = vld [vmem:[#allocation3 + $0x8] sm:$0xf]
        %v458 = vld [vmem:[#allocation3 + $0xc] sm:$0xf]
        %v459 = vld [vmem:[#allocation3 + $0x10] sm:$0xf]
        %v460 = vld [vmem:[#allocation3 + $0x14] sm:$0xf]
        %v461 = vld [vmem:[#allocation3 + $0x18] sm:$0xf]
        %v462 = vld [vmem:[#allocation3 + $0x1c] sm:$0xf]
        %v463 = vld [vmem:[#allocation3 + $0x20] sm:$0xf]
        %v464 = vld [vmem:[#allocation3 + $0x24] sm:$0xf]
        %v465 = vld [vmem:[#allocation3 + $0x28] sm:$0xf]
        %v466 = vld [vmem:[#allocation3 + $0x2c] sm:$0xf]
        %v467 = vld [vmem:[#allocation3 + $0x30] sm:$0xf]
        %v468 = vld [vmem:[#allocation3 + $0x34] sm:$0xf]
        %v469 = vld [vmem:[#allocation3 + $0x38] sm:$0xf]
        %v470 = vld [vmem:[#allocation3 + $0x3c] sm:$0xf]
        %s471 = scalar_lea.vmem [#allocation3], 64
        %v472 = vld [vmem:[%s471] sm:$0xf]
        %v473 = vld [vmem:[%s471 + $0x4] sm:$0xf]
        %v474 = vld [vmem:[%s471 + $0x8] sm:$0xf]
        %v475 = vld [vmem:[%s471 + $0xc] sm:$0xf]
        %v476 = vld [vmem:[%s471 + $0x10] sm:$0xf]
        %v477 = vld [vmem:[%s471 + $0x14] sm:$0xf]
        %v478 = vld [vmem:[%s471 + $0x18] sm:$0xf]
        %v479 = vld [vmem:[%s471 + $0x1c] sm:$0xf]
        %v480 = vld [vmem:[%s471 + $0x20] sm:$0xf]
        %v481 = vld [vmem:[%s471 + $0x24] sm:$0xf]
        %v482 = vld [vmem:[%s471 + $0x28] sm:$0xf]
        %v483 = vld [vmem:[%s471 + $0x2c] sm:$0xf]
        %v484 = vld [vmem:[%s471 + $0x30] sm:$0xf]
        %v485 = vld [vmem:[%s471 + $0x34] sm:$0xf]
        %v486 = vld [vmem:[%s471 + $0x38] sm:$0xf]
        %v487 = vld [vmem:[%s471 + $0x3c] sm:$0xf]
        %489 = vst [vmem:[#allocation1] ss:$9 sm:$0xff] %v447
        %v490 = vld [vmem:[#allocation1] sm:$0xff]
        %493 = vst [vmem:[#allocation1] ss:$9 sm:$0xff] %v448
        %v494 = vld [vmem:[#allocation1] sm:$0xff]
        %497 = vst [vmem:[#allocation1] ss:$9 sm:$0xff] %v449
        %v498 = vld [vmem:[#allocation1] sm:$0xff]
        %501 = vst [vmem:[#allocation1] ss:$9 sm:$0xff] %v450
        %v502 = vld [vmem:[#allocation1] sm:$0xff]
        %505 = vst [vmem:[#allocation1] ss:$9 sm:$0xff] %v451
        %v506 = vld [vmem:[#allocation1] sm:$0xff]
        %509 = vst [vmem:[#allocation1] ss:$9 sm:$0xff] %v452
        %v510 = vld [vmem:[#allocation1] sm:$0xff]
        %513 = vst [vmem:[#allocation1] ss:$9 sm:$0xff] %v453
        %v514 = vld [vmem:[#allocation1] sm:$0xff]
        %517 = vst [vmem:[#allocation1] ss:$9 sm:$0xff] %v454
        %v518 = vld [vmem:[#allocation1] sm:$0xff]
        %v520 = vunpack.c.l.b16 %v490
        %v521 = vunpack.c.l.b16 %v494
        %v522 = vunpack.c.l.b16 %v498
        %v523 = vunpack.c.l.b16 %v502
        %v524 = vunpack.c.l.b16 %v506
        %v525 = vunpack.c.l.b16 %v510
        %v526 = vunpack.c.l.b16 %v514
        %v527 = vunpack.c.l.b16 %v518
        %v528 = vrot.slane %v520, 1
        %v529 = vsel %vm367, %v521, %v528
        %v530 = vrot.slane %v522, 7
        %v531 = vsel %vm371, %v530, %v529
        %v532 = vrot.slane %v523, 6
        %v533 = vsel %vm375, %v532, %v531
        %v534 = vrot.slane %v524, 5
        %vm535 = vcmask 1044484
        %v536 = vsel %vm535, %v534, %v533
        %v537 = vrot.slane %v525, 4
        %vm538 = vcmask 1045509
        %v539 = vsel %vm538, %v537, %v536
        %v540 = vrot.slane %v526, 3
        %vm541 = vcmask 1046534
        %v542 = vsel %vm541, %v540, %v539
        %v543 = vrot.slane %v527, 2
        %vm544 = vcmask 1047559
        %v545 = vsel %vm544, %v543, %v542
        %v546 = vpack.c.b16 %v545, %v545
        %v564 = vunpack.c.l.b16 %v472
        %v565 = vunpack.c.l.b16 %v473
        %v566 = vunpack.c.l.b16 %v474
        %v567 = vunpack.c.l.b16 %v475
        %v568 = vunpack.c.l.b16 %v476
        %v569 = vunpack.c.l.b16 %v477
        %v570 = vunpack.c.l.b16 %v478
        %v571 = vunpack.c.l.b16 %v479
        %v572 = vunpack.c.l.b16 %v480
        %v573 = vunpack.c.l.b16 %v481
        %v574 = vunpack.c.l.b16 %v482
        %v575 = vunpack.c.l.b16 %v483
        %v576 = vunpack.c.l.b16 %v484
        %v577 = vunpack.c.l.b16 %v485
        %v578 = vunpack.c.l.b16 %v486
        %v579 = vunpack.c.l.b16 %v487
        %v580 = vpack.c.b16 %v565, %v564
        %v581 = vpack.c.b16 %v567, %v566
        %v582 = vpack.c.b16 %v569, %v568
        %v583 = vpack.c.b16 %v571, %v570
        %v584 = vpack.c.b16 %v573, %v572
        %v585 = vpack.c.b16 %v575, %v574
        %v586 = vpack.c.b16 %v577, %v576
        %v587 = vpack.c.b16 %v579, %v578
        %596 = vmatpush.bf16.msra.mxu0 %v587
        %597 = vmatpush.bf16.msra.mxu0 %v586
        %598 = vmatpush.bf16.msra.mxu0 %v585
        %599 = vmatpush.bf16.msra.mxu0 %v584
        %600 = vmatpush.bf16.msra.mxu0 %v583
        %601 = vmatpush.bf16.msra.mxu0 %v582
        %602 = vmatpush.bf16.msra.mxu0 %v581
        %603 = vmatpush.bf16.msra.mxu0 %v580
        %604 = vmatmul.bf16.gmra.mxu0 %v546
        %v605 = vpop.f32.mrf.mxu0
        %v606 = vadd.f32 0.0, %v605
        %v607 = vpop.f32.mrf.mxu0
        %608 = vdwg.mxu0
        %609 = vst [vmem:[#allocation1] ss:$9 sm:$0xff] %v447
        %v610 = vld [vmem:[#allocation1] sm:$0xff]
        %612 = vst [vmem:[#allocation1] ss:$9 sm:$0xff] %v448
        %v613 = vld [vmem:[#allocation1] sm:$0xff]
        %615 = vst [vmem:[#allocation1] ss:$9 sm:$0xff] %v449
        %v616 = vld [vmem:[#allocation1] sm:$0xff]
        %618 = vst [vmem:[#allocation1] ss:$9 sm:$0xff] %v450
        %v619 = vld [vmem:[#allocation1] sm:$0xff]
        %621 = vst [vmem:[#allocation1] ss:$9 sm:$0xff] %v451
        %v622 = vld [vmem:[#allocation1] sm:$0xff]
        %624 = vst [vmem:[#allocation1] ss:$9 sm:$0xff] %v452
        %v625 = vld [vmem:[#allocation1] sm:$0xff]
        %627 = vst [vmem:[#allocation1] ss:$9 sm:$0xff] %v453
        %v628 = vld [vmem:[#allocation1] sm:$0xff]
        %630 = vst [vmem:[#allocation1] ss:$9 sm:$0xff] %v454
        %v631 = vld [vmem:[#allocation1] sm:$0xff]
        %v633 = vunpack.c.l.b16 %v610
        %v634 = vunpack.c.l.b16 %v613
        %v635 = vunpack.c.l.b16 %v616
        %v636 = vunpack.c.l.b16 %v619
        %v637 = vunpack.c.l.b16 %v622
        %v638 = vunpack.c.l.b16 %v625
        %v639 = vunpack.c.l.b16 %v628
        %v640 = vunpack.c.l.b16 %v631
        %v641 = vrot.slane %v634, 7
        %v642 = vsel %vm367, %v641, %v633
        %v643 = vrot.slane %v635, 6
        %v644 = vsel %vm371, %v643, %v642
        %v645 = vrot.slane %v636, 5
        %v646 = vsel %vm375, %v645, %v644
        %v647 = vrot.slane %v637, 4
        %v648 = vsel %vm535, %v647, %v646
        %v649 = vrot.slane %v638, 3
        %v650 = vsel %vm538, %v649, %v648
        %v651 = vrot.slane %v639, 2
        %v652 = vsel %vm541, %v651, %v650
        %v653 = vrot.slane %v640, 1
        %v654 = vsel %vm544, %v653, %v652
        %v655 = vpack.c.b16 %v654, %v654
        %v673 = vunpack.c.l.b16 %v455
        %v674 = vunpack.c.l.b16 %v456
        %v675 = vunpack.c.l.b16 %v457
        %v676 = vunpack.c.l.b16 %v458
        %v677 = vunpack.c.l.b16 %v459
        %v678 = vunpack.c.l.b16 %v460
        %v679 = vunpack.c.l.b16 %v461
        %v680 = vunpack.c.l.b16 %v462
        %v681 = vunpack.c.l.b16 %v463
        %v682 = vunpack.c.l.b16 %v464
        %v683 = vunpack.c.l.b16 %v465
        %v684 = vunpack.c.l.b16 %v466
        %v685 = vunpack.c.l.b16 %v467
        %v686 = vunpack.c.l.b16 %v468
        %v687 = vunpack.c.l.b16 %v469
        %v688 = vunpack.c.l.b16 %v470
        %v689 = vpack.c.b16 %v674, %v673
        %v690 = vpack.c.b16 %v676, %v675
        %v691 = vpack.c.b16 %v678, %v677
        %v692 = vpack.c.b16 %v680, %v679
        %v693 = vpack.c.b16 %v682, %v681
        %v694 = vpack.c.b16 %v684, %v683
        %v695 = vpack.c.b16 %v686, %v685
        %v696 = vpack.c.b16 %v688, %v687
        %705 = vmatpush.bf16.msra.mxu0 %v696
        %706 = vmatpush.bf16.msra.mxu0 %v695
        %707 = vmatpush.bf16.msra.mxu0 %v694
        %708 = vmatpush.bf16.msra.mxu0 %v693
        %709 = vmatpush.bf16.msra.mxu0 %v692
        %710 = vmatpush.bf16.msra.mxu0 %v691
        %711 = vmatpush.bf16.msra.mxu0 %v690
        %712 = vmatpush.bf16.msra.mxu0 %v689
        %713 = vmatmul.bf16.gmra.mxu0 %v655
        %v714 = vpop.f32.mrf.mxu0
        %v715 = vadd.f32 %v606, %v714
        %v716 = vpop.f32.mrf.mxu0
        %717 = vdwg.mxu0
        %s718 = scalar_lea.vmem [#allocation2], 1
        %v719 = vld [vmem:[%s718] sm:$0x1]
        %v720 = vld [vmem:[%s718 + $0x1] sm:$0x1]
        %v721 = vld [vmem:[%s718 + $0x2] sm:$0x1]
        %v722 = vld [vmem:[%s718 + $0x3] sm:$0x1]
        %v723 = vld [vmem:[%s718 + $0x4] sm:$0x1]
        %v724 = vld [vmem:[%s718 + $0x5] sm:$0x1]
        %v725 = vld [vmem:[%s718 + $0x6] sm:$0x1]
        %v726 = vld [vmem:[%s718 + $0x7] sm:$0x1]
        %s727 = scalar_lea.vmem [#allocation3], 128
        %v728 = vld [vmem:[%s727] sm:$0xf]
        %v729 = vld [vmem:[%s727 + $0x4] sm:$0xf]
        %v730 = vld [vmem:[%s727 + $0x8] sm:$0xf]
        %v731 = vld [vmem:[%s727 + $0xc] sm:$0xf]
        %v732 = vld [vmem:[%s727 + $0x10] sm:$0xf]
        %v733 = vld [vmem:[%s727 + $0x14] sm:$0xf]
        %v734 = vld [vmem:[%s727 + $0x18] sm:$0xf]
        %v735 = vld [vmem:[%s727 + $0x1c] sm:$0xf]
        %v736 = vld [vmem:[%s727 + $0x20] sm:$0xf]
        %v737 = vld [vmem:[%s727 + $0x24] sm:$0xf]
        %v738 = vld [vmem:[%s727 + $0x28] sm:$0xf]
        %v739 = vld [vmem:[%s727 + $0x2c] sm:$0xf]
        %v740 = vld [vmem:[%s727 + $0x30] sm:$0xf]
        %v741 = vld [vmem:[%s727 + $0x34] sm:$0xf]
        %v742 = vld [vmem:[%s727 + $0x38] sm:$0xf]
        %v743 = vld [vmem:[%s727 + $0x3c] sm:$0xf]
        %745 = vst [vmem:[#allocation1] ss:$9 sm:$0xff] %v719
        %v746 = vld [vmem:[#allocation1] sm:$0xff]
        %749 = vst [vmem:[#allocation1] ss:$9 sm:$0xff] %v720
        %v750 = vld [vmem:[#allocation1] sm:$0xff]
        %753 = vst [vmem:[#allocation1] ss:$9 sm:$0xff] %v721
        %v754 = vld [vmem:[#allocation1] sm:$0xff]
        %757 = vst [vmem:[#allocation1] ss:$9 sm:$0xff] %v722
        %v758 = vld [vmem:[#allocation1] sm:$0xff]
        %761 = vst [vmem:[#allocation1] ss:$9 sm:$0xff] %v723
        %v762 = vld [vmem:[#allocation1] sm:$0xff]
        %765 = vst [vmem:[#allocation1] ss:$9 sm:$0xff] %v724
        %v766 = vld [vmem:[#allocation1] sm:$0xff]
        %769 = vst [vmem:[#allocation1] ss:$9 sm:$0xff] %v725
        %v770 = vld [vmem:[#allocation1] sm:$0xff]
        %773 = vst [vmem:[#allocation1] ss:$9 sm:$0xff] %v726
        %v774 = vld [vmem:[#allocation1] sm:$0xff]
        %v776 = vunpack.c.l.b16 %v746
        %v777 = vunpack.c.l.b16 %v750
        %v778 = vunpack.c.l.b16 %v754
        %v779 = vunpack.c.l.b16 %v758
        %v780 = vunpack.c.l.b16 %v762
        %v781 = vunpack.c.l.b16 %v766
        %v782 = vunpack.c.l.b16 %v770
        %v783 = vunpack.c.l.b16 %v774
        %v784 = vrot.slane %v777, 7
        %v785 = vsel %vm367, %v784, %v776
        %v786 = vrot.slane %v778, 6
        %v787 = vsel %vm371, %v786, %v785
        %v788 = vrot.slane %v779, 5
        %v789 = vsel %vm375, %v788, %v787
        %v790 = vrot.slane %v780, 4
        %v791 = vsel %vm535, %v790, %v789
        %v792 = vrot.slane %v781, 3
        %v793 = vsel %vm538, %v792, %v791
        %v794 = vrot.slane %v782, 2
        %v795 = vsel %vm541, %v794, %v793
        %v796 = vrot.slane %v783, 1
        %v797 = vsel %vm544, %v796, %v795
        %v798 = vpack.c.b16 %v797, %v797
        %v816 = vunpack.c.l.b16 %v728
        %v817 = vunpack.c.l.b16 %v729
        %v818 = vunpack.c.l.b16 %v730
        %v819 = vunpack.c.l.b16 %v731
        %v820 = vunpack.c.l.b16 %v732
        %v821 = vunpack.c.l.b16 %v733
        %v822 = vunpack.c.l.b16 %v734
        %v823 = vunpack.c.l.b16 %v735
        %v824 = vunpack.c.l.b16 %v736
        %v825 = vunpack.c.l.b16 %v737
        %v826 = vunpack.c.l.b16 %v738
        %v827 = vunpack.c.l.b16 %v739
        %v828 = vunpack.c.l.b16 %v740
        %v829 = vunpack.c.l.b16 %v741
        %v830 = vunpack.c.l.b16 %v742
        %v831 = vunpack.c.l.b16 %v743
        %v832 = vpack.c.b16 %v817, %v816
        %v833 = vpack.c.b16 %v819, %v818
        %v834 = vpack.c.b16 %v821, %v820
        %v835 = vpack.c.b16 %v823, %v822
        %v836 = vpack.c.b16 %v825, %v824
        %v837 = vpack.c.b16 %v827, %v826
        %v838 = vpack.c.b16 %v829, %v828
        %v839 = vpack.c.b16 %v831, %v830
        %848 = vmatpush.bf16.msra.mxu0 %v839
        %849 = vmatpush.bf16.msra.mxu0 %v838
        %850 = vmatpush.bf16.msra.mxu0 %v837
        %851 = vmatpush.bf16.msra.mxu0 %v836
        %852 = vmatpush.bf16.msra.mxu0 %v835
        %853 = vmatpush.bf16.msra.mxu0 %v834
        %854 = vmatpush.bf16.msra.mxu0 %v833
        %855 = vmatpush.bf16.msra.mxu0 %v832
        %856 = vmatmul.bf16.gmra.mxu0 %v798
        %v857 = vpop.f32.mrf.mxu0
        %v858 = vadd.f32 0.0, %v857
        %v859 = vpop.f32.mrf.mxu0
        %860 = vdwg.mxu0
        %v861 = vadd.f32 %v715, %v858
        %v862 = vld [vmem:[%s718] sm:$0x1]
        %v863 = vld [vmem:[%s718 + $0x1] sm:$0x1]
        %v864 = vld [vmem:[%s718 + $0x2] sm:$0x1]
        %v865 = vld [vmem:[%s718 + $0x3] sm:$0x1]
        %v866 = vld [vmem:[%s718 + $0x4] sm:$0x1]
        %v867 = vld [vmem:[%s718 + $0x5] sm:$0x1]
        %v868 = vld [vmem:[%s718 + $0x6] sm:$0x1]
        %v869 = vld [vmem:[%s718 + $0x7] sm:$0x1]
        %s870 = scalar_lea.vmem [#allocation3], 192
        %v871 = vld [vmem:[%s870] sm:$0xf]
        %v872 = vld [vmem:[%s870 + $0x4] sm:$0xf]
        %v873 = vld [vmem:[%s870 + $0x8] sm:$0xf]
        %v874 = vld [vmem:[%s870 + $0xc] sm:$0xf]
        %v875 = vld [vmem:[%s870 + $0x10] sm:$0xf]
        %v876 = vld [vmem:[%s870 + $0x14] sm:$0xf]
        %v877 = vld [vmem:[%s870 + $0x18] sm:$0xf]
        %v878 = vld [vmem:[%s870 + $0x1c] sm:$0xf]
        %v879 = vld [vmem:[%s870 + $0x20] sm:$0xf]
        %v880 = vld [vmem:[%s870 + $0x24] sm:$0xf]
        %v881 = vld [vmem:[%s870 + $0x28] sm:$0xf]
        %v882 = vld [vmem:[%s870 + $0x2c] sm:$0xf]
        %v883 = vld [vmem:[%s870 + $0x30] sm:$0xf]
        %v884 = vld [vmem:[%s870 + $0x34] sm:$0xf]
        %v885 = vld [vmem:[%s870 + $0x38] sm:$0xf]
        %v886 = vld [vmem:[%s870 + $0x3c] sm:$0xf]
        %888 = vst [vmem:[#allocation1] ss:$9 sm:$0xff] %v862
        %v889 = vld [vmem:[#allocation1] sm:$0xff]
        %892 = vst [vmem:[#allocation1] ss:$9 sm:$0xff] %v863
        %v893 = vld [vmem:[#allocation1] sm:$0xff]
        %896 = vst [vmem:[#allocation1] ss:$9 sm:$0xff] %v864
        %v897 = vld [vmem:[#allocation1] sm:$0xff]
        %900 = vst [vmem:[#allocation1] ss:$9 sm:$0xff] %v865
        %v901 = vld [vmem:[#allocation1] sm:$0xff]
        %904 = vst [vmem:[#allocation1] ss:$9 sm:$0xff] %v866
        %v905 = vld [vmem:[#allocation1] sm:$0xff]
        %908 = vst [vmem:[#allocation1] ss:$9 sm:$0xff] %v867
        %v909 = vld [vmem:[#allocation1] sm:$0xff]
        %912 = vst [vmem:[#allocation1] ss:$9 sm:$0xff] %v868
        %v913 = vld [vmem:[#allocation1] sm:$0xff]
        %916 = vst [vmem:[#allocation1] ss:$9 sm:$0xff] %v869
        %v917 = vld [vmem:[#allocation1] sm:$0xff]
        %v919 = vunpack.c.l.b16 %v889
        %v920 = vunpack.c.l.b16 %v893
        %v921 = vunpack.c.l.b16 %v897
        %v922 = vunpack.c.l.b16 %v901
        %v923 = vunpack.c.l.b16 %v905
        %v924 = vunpack.c.l.b16 %v909
        %v925 = vunpack.c.l.b16 %v913
        %v926 = vunpack.c.l.b16 %v917
        %v927 = vrot.slane %v919, 1
        %v928 = vsel %vm367, %v920, %v927
        %v929 = vrot.slane %v921, 7
        %v930 = vsel %vm371, %v929, %v928
        %v931 = vrot.slane %v922, 6
        %v932 = vsel %vm375, %v931, %v930
        %v933 = vrot.slane %v923, 5
        %v934 = vsel %vm535, %v933, %v932
        %v935 = vrot.slane %v924, 4
        %v936 = vsel %vm538, %v935, %v934
        %v937 = vrot.slane %v925, 3
        %v938 = vsel %vm541, %v937, %v936
        %v939 = vrot.slane %v926, 2
        %v940 = vsel %vm544, %v939, %v938
        %v941 = vpack.c.b16 %v940, %v940
        %v959 = vunpack.c.l.b16 %v871
        %v960 = vunpack.c.l.b16 %v872
        %v961 = vunpack.c.l.b16 %v873
        %v962 = vunpack.c.l.b16 %v874
        %v963 = vunpack.c.l.b16 %v875
        %v964 = vunpack.c.l.b16 %v876
        %v965 = vunpack.c.l.b16 %v877
        %v966 = vunpack.c.l.b16 %v878
        %v967 = vunpack.c.l.b16 %v879
        %v968 = vunpack.c.l.b16 %v880
        %v969 = vunpack.c.l.b16 %v881
        %v970 = vunpack.c.l.b16 %v882
        %v971 = vunpack.c.l.b16 %v883
        %v972 = vunpack.c.l.b16 %v884
        %v973 = vunpack.c.l.b16 %v885
        %v974 = vunpack.c.l.b16 %v886
        %v975 = vpack.c.b16 %v960, %v959
        %v976 = vpack.c.b16 %v962, %v961
        %v977 = vpack.c.b16 %v964, %v963
        %v978 = vpack.c.b16 %v966, %v965
        %v979 = vpack.c.b16 %v968, %v967
        %v980 = vpack.c.b16 %v970, %v969
        %v981 = vpack.c.b16 %v972, %v971
        %v982 = vpack.c.b16 %v974, %v973
        %991 = vmatpush.bf16.msra.mxu0 %v982
        %992 = vmatpush.bf16.msra.mxu0 %v981
        %993 = vmatpush.bf16.msra.mxu0 %v980
        %994 = vmatpush.bf16.msra.mxu0 %v979
        %995 = vmatpush.bf16.msra.mxu0 %v978
        %996 = vmatpush.bf16.msra.mxu0 %v977
        %997 = vmatpush.bf16.msra.mxu0 %v976
        %998 = vmatpush.bf16.msra.mxu0 %v975
        %999 = vmatmul.bf16.gmra.mxu0 %v941
        %v1000 = vpop.f32.mrf.mxu0
        %v1001 = vadd.f32 0.0, %v1000
        %v1002 = vpop.f32.mrf.mxu0
        %1003 = vdwg.mxu0
        %v1004 = vadd.f32 %v861, %v1001
        %v1005 = vld [vmem:[%s4] sm:$0x1]
        %v1007 = vperm.slane %v1005, 0
        %v1009 = vadd.f32 %v1004, %v1007
        %v1010 = vtanh.pop %v1009
        %v1011 = vpack.c.bf16 %v1010, %v1010
        %1012 = vst [vmem:[%s239] sm:$0xf] %v1011
        %p1013 = scmp.lt.s32.totalorder %s17, 1
        %s1014 = scalar_select %p1013, %s17, 1
        %s1015 = smul.addr %s1014, 4
        %s1016 = scalar_lea.vmem %s5, %s1015
        // Predicated region
        $region45: #{encoder_forward.1} parent=39 // pred_check
          %p1017 = pneg %p145
        $region46: #{encoder_forward.1} parent=39 // pred_check_branch
          %1019 = sbr.rel (%p1017) target = $region48
        $region47: #{encoder_forward.1} parent=39 // pred_region
          _
        $region48: #{encoder_forward.1} parent=39 // pred_fallthru
          _
      $region40: #{encoder_forward.1} parent=5 // pred_fallthru
        _
      %p1020 = scmp.le.s32.totalorder 2, %s12
      // Predicated region
      $region49: #{encoder_forward.1} parent=5 // pred_check
        %p1021 = pneg %p1020
      $region50: #{encoder_forward.1} parent=5 // pred_check_branch
        %1023 = sbr.rel (%p1021) target = $region52
      $region51: #{encoder_forward.1} parent=5 // pred_region
        %s1024 = ssub.s32 %s12, 2
        // Predicated region
        $region53: #{encoder_forward.1} parent=51 // pred_check
          %p1025 = pneg %p151
        $region54: #{encoder_forward.1} parent=51 // pred_check_branch
          %1027 = sbr.rel (%p1025) target = $region56
        $region55: #{encoder_forward.1} parent=51 // pred_region
          %p1028 = scmp.lt.s32.totalorder %s18, 1
          %s1029 = scalar_select %p1028, %s18, 1
          %s1030 = smul.addr %s1029, 4
          %s1031 = scalar_lea.vmem %s5, %s1030
        $region56: #{encoder_forward.1} parent=51 // pred_fallthru
          _
      $region52: #{encoder_forward.1} parent=5 // pred_fallthru
        _
    $region6: #{encoder_forward.1} parent=1 // loop_footer
      %s16 = sadd.s32 1, %s12
    $region7: #{encoder_forward.1} parent=1 // loop_footer_branch
      %11 = sbr.rel target = $region3
    $region8: #{encoder_forward.1} parent=1 // loop_exit
      _
    %1032 = vsyncpa [#allocation4], 1
    %s1033 = scalar_lea.sflag [#allocation4], 1
    %1034 = vsyncpa %s1033, 1

</llo_original>
